<compile_context>
chip_gen: v5e
topology: v5e:2x2
jax: 0.10.0
libtpu: 0.0.40
codegen_flags: <defaults>
</compile_context>

<pallas_src>
import jax
import jax.numpy as jnp
from jax import lax
from jax.experimental import pallas as pl
from jax.experimental.pallas import tpu as pltpu


# ----------------------------- Pallas kernels ------------------------------ #

def _bn_stats_kernel(x_ref, sum_ref, sumsq_ref):
    """Accumulate per-channel partial sums / sums-of-squares into an (8, D) slab."""
    i = pl.program_id(0)

    @pl.when(i == 0)
    def _():
        sum_ref[...] = jnp.zeros_like(sum_ref)
        sumsq_ref[...] = jnp.zeros_like(sumsq_ref)

    x = x_ref[...].astype(jnp.float32)              # (tm, D_pad)
    tm, d = x.shape
    xg = x.reshape(tm // 8, 8, d)                   # sublane-aligned grouping
    sum_ref[...] += jnp.sum(xg, axis=0)             # VPU vreg adds, no per-tile XLU
    sumsq_ref[...] += jnp.sum(xg * xg, axis=0)


def _linear_kernel(x_ref, w_ref, b_ref, o_ref):
    """o = x @ W^T + b with bf16 MXU operands and f32 accumulation."""
    acc = lax.dot_general(
        x_ref[...], w_ref[...],                     # (tm, D) bf16, (tn, D) bf16
        dimension_numbers=(((1,), (1,)), ((), ())), # contract last dims -> (tm, tn)
        preferred_element_type=jnp.float32)
    o_ref[...] = acc + b_ref[...]                   # f32 bias add, f32 output


# ------------------------------- helpers ----------------------------------- #

def _round_up(x, m):
    return ((x + m - 1) // m) * m


def _pick_tiles(M, D_pad, N_pad, vmem_budget=24 * 1024 * 1024):
    """Pick (tm, tn) so the double-buffered footprint stays well under the scoped
    VMEM default on every generation (v7x has only 64 MiB physical VMEM)."""
    tn = min(N_pad, 1024)
    while tn > 128 and (N_pad % tn != 0 or 2 * tn * D_pad * 2 > vmem_budget // 3):
        tn -= 128

    tm = 64
    for cand in (1024, 512, 256, 128, 64):
        fp = (2 * cand * D_pad * 2      # x tile, bf16, double-buffered
              + 2 * tn * D_pad * 2      # weight slab, bf16, double-buffered
              + 2 * cand * tn * 4       # output tile, f32, double-buffered
              + 2 * tn * 4)             # bias
        if fp <= vmem_budget:
            tm = cand
            break
    tm = min(tm, _round_up(M, 8))       # don't over-pad tiny inputs
    return tm, tn


def _bn_batch_stats(x_pad, M, tm):
    """Training-mode BatchNorm1d per-channel (mean, invstd) over the M real rows.

    Padded rows are zero and contribute nothing to the sums; dividing by the true
    row count M keeps the statistics exact.
    """
    M_pad, D_pad = x_pad.shape
    s, ss = pl.pallas_call(
        _bn_stats_kernel,
        out_shape=(
            jax.ShapeDtypeStruct((8, D_pad), jnp.float32),
            jax.ShapeDtypeStruct((8, D_pad), jnp.float32),
        ),
        grid_spec=pltpu.PrefetchScalarGridSpec(
            num_scalar_prefetch=0,
            grid=(M_pad // tm,),
            in_specs=[pl.BlockSpec((tm, D_pad), lambda i: (i, 0))],
            out_specs=(
                pl.BlockSpec((8, D_pad), lambda i: (0, 0)),
                pl.BlockSpec((8, D_pad), lambda i: (0, 0)),
            ),
        ),
        compiler_params=pltpu.CompilerParams(
            dimension_semantics=("arbitrary",)),      # cross-iteration accumulator
    )(x_pad)

    mean = jnp.sum(s, axis=0) / M                      # (D_pad,)
    # TODO(synk): E[x^2]-E[x]^2 can cancel for data with large mean; a shifted /
    # two-pass accumulation would be safer for such inputs.
    var = jnp.maximum(jnp.sum(ss, axis=0) / M - mean * mean, 0.0)
    invstd = lax.rsqrt(var + 1e-5)
    return mean, invstd


# ------------------------------- wrapper ------------------------------------ #

def output_layer_forward(x, weight, bias, *, use_bn=False):
    """x: (B, T, in_dim); weight: (out_dim, in_dim); bias: (out_dim,)."""
    B, T, D = x.shape
    N = weight.shape[0]
    M = B * T

    D_pad = _round_up(D, 128)
    N_pad = _round_up(N, 128)
    tm, tn = _pick_tiles(M, D_pad, N_pad)
    M_pad = _round_up(M, tm)

    # Lane-dense, row-tile-aligned activation slab in bf16 (half the HBM traffic).
    xf = x.reshape(M, D).astype(jnp.float32)
    x_pad = jnp.pad(xf, ((0, M_pad - M), (0, D_pad - D))).astype(jnp.bfloat16)

    # Weights kept in natural (N, D) layout; padded with zeros (zero rows/cols do
    # not change the result on the real output slice).
    w_pad = jnp.pad(weight.astype(jnp.float32), ((0, N_pad - N), (0, D_pad - D)))
    b_pad = jnp.pad(bias.astype(jnp.float32), (0, N_pad - N))

    if use_bn:
        mean, invstd = _bn_batch_stats(x_pad, M, tm)
        # Fold BN into the linear layer: (x-mean)*invstd @ W^T + b
        #                              = x @ (invstd*W)^T + (b - W @ (mean*invstd))
        w_fold = w_pad * invstd[None, :]
        b_fold = b_pad - w_pad @ (mean * invstd)
    else:
        w_fold = w_pad
        b_fold = b_pad

    w_bf16 = w_fold.astype(jnp.bfloat16)               # (N_pad, D_pad)
    b2 = b_fold.reshape(1, N_pad)                      # f32 bias, lane-dense

    # Grid: N (weight slab) on the slow axis so each (tn, D_pad) weight block stays
    # VMEM-resident across the whole inner M sweep; both axes are parallel
    # (megacore-shardable) since the full K=D contraction happens in one step.
    out = pl.pallas_call(
        _linear_kernel,
        out_shape=jax.ShapeDtypeStruct((M_pad, N_pad), jnp.float32),
        grid_spec=pltpu.PrefetchScalarGridSpec(
            num_scalar_prefetch=0,
            grid=(N_pad // tn, M_pad // tm),
            in_specs=[
                pl.BlockSpec((tm, D_pad), lambda j, i: (i, 0)),   # x row tile (bf16)
                pl.BlockSpec((tn, D_pad), lambda j, i: (j, 0)),   # folded W (bf16)
                pl.BlockSpec((1, tn), lambda j, i: (0, j)),       # folded bias (f32)
            ],
            out_specs=pl.BlockSpec((tm, tn), lambda j, i: (i, j)),
        ),
        compiler_params=pltpu.CompilerParams(
            dimension_semantics=("parallel", "parallel")),
    )(x_pad, w_bf16, b2)

    return out[:M, :N].reshape(B, T, N)


# ----------------------------- reference (JAX) ------------------------------ #

def output_layer_ref(x, weight, bias, *, use_bn=False):
    B, T, D = x.shape
    xf = x.reshape(B * T, D).astype(jnp.float32)
    if use_bn:
        mean = jnp.mean(xf, axis=0, keepdims=True)
        var = jnp.mean(xf * xf, axis=0, keepdims=True) - mean * mean
        xf = (xf - mean) / jnp.sqrt(var + 1e-5)
    out = xf @ weight.T + bias[None, :]
    return out.reshape(B, T, -1)


# ---------------------------------- main ------------------------------------ #

if __name__ == "__main__":
    # Small shapes consistent with the module: (batch, seq, in_dim) -> (batch, seq, out_dim)
    B, T, in_dim, out_dim = 2, 8, 32, 64

    key = jax.random.PRNGKey(0)
    kx, kw, kb = jax.random.split(key, 3)

    x = jax.random.normal(kx, (B, T, in_dim), dtype=jnp.float32)
    # nn.Linear default init: U(-1/sqrt(in_dim), 1/sqrt(in_dim))
    bound = 1.0 / (in_dim ** 0.5)
    weight = jax.random.uniform(kw, (out_dim, in_dim), jnp.float32, -bound, bound)
    bias = jax.random.uniform(kb, (out_dim,), jnp.float32, -bound, bound)

    ok = True
    for use_bn in (False, True):
        out = output_layer_forward(x, weight, bias, use_bn=use_bn)
        out = jax.block_until_ready(out)
        ref = output_layer_ref(x, weight, bias, use_bn=use_bn)
        assert out.shape == (B, T, out_dim)
        # bf16 MXU operands (f32 accumulation) -> looser tolerance vs. the f32 reference.
        ok = ok and bool(jnp.allclose(out, ref, atol=5e-2, rtol=5e-2))

    if ok:
        print("KERNEL_OK")
    else:
        print("KERNEL_MISMATCH")
</pallas_src>

<mosaic_0001>
module attributes {stable_mosaic.version = 11 : i64} {
  func.func @_linear_kernel(%arg0: i32, %arg1: i32, %arg2: memref<16x128xbf16, #tpu.memory_space<vmem>>, %arg3: memref<128x128xbf16, #tpu.memory_space<vmem>>, %arg4: memref<1x128xf32, #tpu.memory_space<vmem>>, %arg5: memref<16x128xf32, #tpu.memory_space<vmem>>) attributes {dimension_semantics = [#tpu.dimension_semantics<parallel>, #tpu.dimension_semantics<parallel>], iteration_bounds = array<i64: 1, 1>, scalar_prefetch = 0 : i64, scratch_operands = 0 : i64, tpu.core_type = #tpu.core_type<tc>, window_params = [{transform_indices = @transform_0, window_bounds = array<i64: 16, 128>}, {transform_indices = @transform_1, window_bounds = array<i64: 128, 128>}, {transform_indices = @transform_2, window_bounds = array<i64: 1, 128>}, {transform_indices = @transform_3, window_bounds = array<i64: 16, 128>}]} {
    %c0 = arith.constant 0 : index
    %c0_0 = arith.constant 0 : index
    %0 = vector.load %arg2[%c0, %c0_0] : memref<16x128xbf16, #tpu.memory_space<vmem>>, vector<16x128xbf16>
    %c0_1 = arith.constant 0 : index
    %c0_2 = arith.constant 0 : index
    %1 = vector.load %arg3[%c0_1, %c0_2] : memref<128x128xbf16, #tpu.memory_space<vmem>>, vector<128x128xbf16>
    %cst = arith.constant dense<0.000000e+00> : vector<16x128xf32>
    %2 = tpu.matmul %0, %1, %cst {dimension_numbers = #tpu.dot_dimension_numbers<[1], [1], [0], [0], [0, 0, 1, 0], [], []>} : vector<16x128xbf16>, vector<128x128xbf16>, vector<16x128xf32> -> vector<16x128xf32>
    %c0_3 = arith.constant 0 : index
    %c0_4 = arith.constant 0 : index
    %3 = vector.load %arg4[%c0_3, %c0_4] : memref<1x128xf32, #tpu.memory_space<vmem>>, vector<1x128xf32>
    %4 = vector.broadcast %3 : vector<1x128xf32> to vector<16x128xf32>
    %5 = arith.addf %2, %4 : vector<16x128xf32>
    %c0_5 = arith.constant 0 : index
    %c0_6 = arith.constant 0 : index
    %6 = vector.load %arg5[%c0_5, %c0_6] : memref<16x128xf32, #tpu.memory_space<vmem>>, vector<16x128xf32>
    tpu.vector_store %arg5[%c0_5, %c0_6], %5 {strides = array<i32>} : memref<16x128xf32, #tpu.memory_space<vmem>>, vector<16x128xf32>,
    return
  }
  func.func @transform_0(%arg0: i32, %arg1: i32) -> (i32, i32) {
    %c0_i32 = arith.constant 0 : i32
    %c0_i32_0 = arith.constant 0 : i32
    return %arg1, %c0_i32 : i32, i32
  }
  func.func @transform_1(%arg0: i32, %arg1: i32) -> (i32, i32) {
    %c0_i32 = arith.constant 0 : i32
    %c0_i32_0 = arith.constant 0 : i32
    return %arg0, %c0_i32 : i32, i32
  }
  func.func @transform_2(%arg0: i32, %arg1: i32) -> (i32, i32) {
    %c0_i32 = arith.constant 0 : i32
    %c0_i32_0 = arith.constant 0 : i32
    return %c0_i32, %arg0 : i32, i32
  }
  func.func @transform_3(%arg0: i32, %arg1: i32) -> (i32, i32) {
    %c0_i32 = arith.constant 0 : i32
    return %arg1, %arg0 : i32, i32
  }
}

</mosaic_0001>

<llo_original>
// kernel: tpu_custom_call.1
$region0: #{tpu_custom_call.1}
  #allocation0 [shape = 'u32[]', space=smem, size = 0x4, offset = 0x4, fixed_abs, tag = 'smem constant byte address 0x4 - core index']
  #allocation1 [shape = 'u32[72,128]{1,0:T(1,128)}', space=vmem, size = 0x9000, scoped, tag = 'internal scratch']
  %s0 = inlined_call_operand.hbm [shape: bf16[16,128], index: 0, kind: input, shape index: {}]
  %s1 = inlined_call_operand.hbm [shape: bf16[128,128], index: 1, kind: input, shape index: {}]
  %s2 = inlined_call_operand.vmem [shape: f32[1,128], index: 2, kind: input, shape index: {}]
  %s3 = inlined_call_operand.hbm [shape: f32[16,128], index: 3, kind: output, shape index: {}]
  %s4 = sld [smem:[#allocation0]]
  $region30: #{tpu_custom_call.1} parent=0
    _
  %s6 = ssub.s32 1, %s4
  %s7 = scalar_select 0, %s6, %s4
  $region1: #{tpu_custom_call.1} parent=0
    #allocation2 [shape = 'u8[4096]{0}', space=vmem, size = 0x1000, scoped, tag = 'input window, operand 0, single buffered']
    #allocation3 [shape = 's32[1]{0}', space=sflag, size = 0x4, scoped, tag = 'scoped memory for tpu_custom_call.1']
    #allocation4 [shape = 's32[1]{0}', space=sflag, size = 0x4, scoped, tag = 'scoped memory for tpu_custom_call.1']
    #allocation5 [shape = 'u8[32768]{0}', space=vmem, size = 0x8000, scoped, tag = 'input window, operand 1, single buffered']
    #allocation6 [shape = 's32[1]{0}', space=sflag, size = 0x4, scoped, tag = 'scoped memory for tpu_custom_call.1']
    #allocation7 [shape = 'u8[8192]{0}', space=vmem, size = 0x2000, scoped, tag = 'output window, operand 0, single buffered']
    %8 = vsyncpa [#allocation3], 0
    %9 = vsyncpa [#allocation6], 0
    %10 = vsyncpa [#allocation4], 0
    // Predicated region
    $region2: #{tpu_custom_call.1} parent=1 // pred_check
      _
    $region3: #{tpu_custom_call.1} parent=1 // pred_check_branch
      %12 = sbr.rel (0) target = $region5
    $region4: #{tpu_custom_call.1} parent=1 // pred_region
      %14 = vsyncadd [#allocation3], 0
      %s15 = sshll.u32 %s0, 4
      %s16 = int_to_ptr.hbm [resolvable:$true] %s15
      %s17 = sshll.u32 [#allocation2], 4
      %s18 = int_to_ptr.vmem [resolvable:$true] %s17
      %23 = dma.hbm_to_vmem [thread:$0]  %s16, 128, %s18, [#allocation3], 64, 64, 4
    $region5: #{tpu_custom_call.1} parent=1 // pred_fallthru
      _
    // Predicated region
    $region6: #{tpu_custom_call.1} parent=1 // pred_check
      _
    $region7: #{tpu_custom_call.1} parent=1 // pred_check_branch
      %25 = sbr.rel (0) target = $region9
    $region8: #{tpu_custom_call.1} parent=1 // pred_region
      %27 = vsyncadd [#allocation6], 0
      %s28 = sshll.u32 %s1, 4
      %s29 = int_to_ptr.hbm [resolvable:$true] %s28
      %s30 = sshll.u32 [#allocation5], 4
      %s31 = int_to_ptr.vmem [resolvable:$true] %s30
      %36 = dma.hbm_to_vmem [thread:$0]  %s29, 1024, %s31, [#allocation6], 64, 64, 4
    $region9: #{tpu_custom_call.1} parent=1 // pred_fallthru
      _
    // Predicated region
    $region10: #{tpu_custom_call.1} parent=1 // pred_check
      _
    $region11: #{tpu_custom_call.1} parent=1 // pred_check_branch
      %38 = sbr.rel (0) target = $region13
    $region12: #{tpu_custom_call.1} parent=1 // pred_region
      _
    $region13: #{tpu_custom_call.1} parent=1 // pred_fallthru
      _
    // Predicated region
    $region14: #{tpu_custom_call.1} parent=1 // pred_check
      _
    $region15: #{tpu_custom_call.1} parent=1 // pred_check_branch
      %40 = sbr.rel (0) target = $region17
    $region16: #{tpu_custom_call.1} parent=1 // pred_region
      %42 = dma.done [#allocation3], 128
    $region17: #{tpu_custom_call.1} parent=1 // pred_fallthru
      _
    // Predicated region
    $region18: #{tpu_custom_call.1} parent=1 // pred_check
      _
    $region19: #{tpu_custom_call.1} parent=1 // pred_check_branch
      %44 = sbr.rel (0) target = $region21
    $region20: #{tpu_custom_call.1} parent=1 // pred_region
      %46 = dma.done [#allocation6], 1024
    $region21: #{tpu_custom_call.1} parent=1 // pred_fallthru
      _
    %v47 = vld [vmem:[#allocation2] sm:$0xf]
    %v48 = vld [vmem:[#allocation2 + $0x4] sm:$0xf]
    %v49 = vld [vmem:[#allocation5] sm:$0xf]
    %v50 = vld [vmem:[#allocation5 + $0x4] sm:$0xf]
    %v51 = vld [vmem:[#allocation5 + $0x8] sm:$0xf]
    %v52 = vld [vmem:[#allocation5 + $0xc] sm:$0xf]
    %v53 = vld [vmem:[#allocation5 + $0x10] sm:$0xf]
    %v54 = vld [vmem:[#allocation5 + $0x14] sm:$0xf]
    %v55 = vld [vmem:[#allocation5 + $0x18] sm:$0xf]
    %v56 = vld [vmem:[#allocation5 + $0x1c] sm:$0xf]
    %v57 = vld [vmem:[#allocation5 + $0x20] sm:$0xf]
    %v58 = vld [vmem:[#allocation5 + $0x24] sm:$0xf]
    %v59 = vld [vmem:[#allocation5 + $0x28] sm:$0xf]
    %v60 = vld [vmem:[#allocation5 + $0x2c] sm:$0xf]
    %v61 = vld [vmem:[#allocation5 + $0x30] sm:$0xf]
    %v62 = vld [vmem:[#allocation5 + $0x34] sm:$0xf]
    %v63 = vld [vmem:[#allocation5 + $0x38] sm:$0xf]
    %v64 = vld [vmem:[#allocation5 + $0x3c] sm:$0xf]
    %v65 = vld [vmem:[%s2] sm:$0x1]
    %v67 = vperm.slane %v65, 0
    %v71 = vunpack.c.l.b16 %v47
    %v72 = vunpack.c.l.b16 %v48
    %v73 = vpack.c.b16 %v72, %v71
    %v91 = vunpack.c.l.b16 %v49
    %v92 = vunpack.c.l.b16 %v50
    %v93 = vunpack.c.l.b16 %v51
    %v94 = vunpack.c.l.b16 %v52
    %v95 = vunpack.c.l.b16 %v53
    %v96 = vunpack.c.l.b16 %v54
    %v97 = vunpack.c.l.b16 %v55
    %v98 = vunpack.c.l.b16 %v56
    %v99 = vunpack.c.l.b16 %v57
    %v100 = vunpack.c.l.b16 %v58
    %v101 = vunpack.c.l.b16 %v59
    %v102 = vunpack.c.l.b16 %v60
    %v103 = vunpack.c.l.b16 %v61
    %v104 = vunpack.c.l.b16 %v62
    %v105 = vunpack.c.l.b16 %v63
    %v106 = vunpack.c.l.b16 %v64
    %v107 = vpack.c.b16 %v92, %v91
    %v108 = vpack.c.b16 %v94, %v93
    %v109 = vpack.c.b16 %v96, %v95
    %v110 = vpack.c.b16 %v98, %v97
    %v111 = vpack.c.b16 %v100, %v99
    %v112 = vpack.c.b16 %v102, %v101
    %v113 = vpack.c.b16 %v104, %v103
    %v114 = vpack.c.b16 %v106, %v105
    %123 = vmatpush.bf16.xpose.msra.mxu0 %v114
    %124 = vmatpush.bf16.xpose.msra.mxu0 %v113
    %125 = vmatpush.bf16.xpose.msra.mxu0 %v112
    %126 = vmatpush.bf16.xpose.msra.mxu0 %v111
    %127 = vmatpush.bf16.xpose.msra.mxu0 %v110
    %128 = vmatpush.bf16.xpose.msra.mxu0 %v109
    %129 = vmatpush.bf16.xpose.msra.mxu0 %v108
    %130 = vmatpush.bf16.xpose.msra.mxu0 %v107
    %131 = vmatmul.bf16.gmra.mxu0 %v73
    %v132 = vpop.f32.mrf.mxu0
    %v133 = vadd.f32 %v67, %v132
    %v134 = vpop.f32.mrf.mxu0
    %v135 = vadd.f32 %v67, %v134
    %136 = vdwg.mxu0
    %137 = vst [vmem:[#allocation7] sm:$0xff] %v133
    %138 = vst [vmem:[#allocation7 + $0x8] sm:$0xff] %v135
    // Predicated region
    $region22: #{tpu_custom_call.1} parent=1 // pred_check
      _
    $region23: #{tpu_custom_call.1} parent=1 // pred_check_branch
      %140 = sbr.rel (0) target = $region25
    $region24: #{tpu_custom_call.1} parent=1 // pred_region
      %142 = vsyncadd [#allocation4], 0
      %s143 = sshll.u32 [#allocation7], 4
      %s144 = int_to_ptr.vmem [resolvable:$true] %s143
      %s145 = sshll.u32 %s3, 4
      %s146 = int_to_ptr.hbm [resolvable:$true] %s145
      %151 = dma.vmem_to_hbm [thread:$0]  %s144, 256, %s146, [#allocation4], 128, 128, 8
    $region25: #{tpu_custom_call.1} parent=1 // pred_fallthru
      _
    // Predicated region
    $region26: #{tpu_custom_call.1} parent=1 // pred_check
      _
    $region27: #{tpu_custom_call.1} parent=1 // pred_check_branch
      %153 = sbr.rel (0) target = $region29
    $region28: #{tpu_custom_call.1} parent=1 // pred_region
      %155 = dma.done [#allocation4], 256
    $region29: #{tpu_custom_call.1} parent=1 // pred_fallthru
      _
    %156 = vsyncpa [#allocation3], 1
    %157 = vsyncpa [#allocation6], 1
    %158 = vsyncpa [#allocation4], 1

</llo_original>
